<compile_context>
chip_gen: v7x
topology: tpu7x:2x2x1
jax: 0.10.0
libtpu: 0.0.40
codegen_flags: <defaults>
</compile_context>

<pallas_src>
import functools
from math import prod

import jax
import jax.numpy as jnp
from jax.experimental import pallas as pl
from jax.experimental.pallas import tpu as pltpu

_LANE = 128
_SUBLANE = 8

# TODO(synk): flip to True (pltpu.CORE_PARALLEL on the split axis) once verified
# on v7x hardware; kept off so the kernel is safe on all generations.
_USE_CORE_PARALLEL = False


def _chip_caps():
    """Return (two_tensorcores, vmem_limit_bytes) for the current TPU generation."""
    try:
        kind = jax.devices()[0].device_kind.lower()
    except Exception:  # pragma: no cover - CPU / interpret fallbacks
        kind = ""
    two_tc = "v7" in kind  # v7x: 2 TensorCores per chip, 64 MiB VMEM per TC
    if ("v5e" in kind) or ("v5 lite" in kind) or ("v6" in kind) or ("trillium" in kind):
        return two_tc, 80 * 1024 * 1024      # 128 MiB physical VMEM -> big tiles
    if two_tc:
        return two_tc, 40 * 1024 * 1024      # v7x: stay well inside 64 MiB/TC
    return two_tc, 48 * 1024 * 1024          # conservative default (v4/v5p/unknown)


def _iou_partials_kernel(o_ref, t_ref, tp_ref, so_ref, st_ref, *,
                         npc, n_col, tail_len):
    """Accumulate per-row sum(o*t), sum(o), sum(t) over the column (reduce) axis.

    o_ref / t_ref : (TR, chunk) tile of the (R, Q) slab.
    tp/so/st_ref  : (1, TR, 1) resident f32 accumulator (one block per (split,row)).
    """
    c = pl.program_id(2)

    @pl.when(c == 0)
    def _init():
        tp_ref[...] = jnp.zeros_like(tp_ref)
        so_ref[...] = jnp.zeros_like(so_ref)
        st_ref[...] = jnp.zeros_like(st_ref)

    o = o_ref[...].astype(jnp.float32)
    t = t_ref[...].astype(jnp.float32)

    def _acc(o_v, t_v):
        tp_ref[0] += jnp.sum(o_v * t_v, axis=1, keepdims=True)
        so_ref[0] += jnp.sum(o_v, axis=1, keepdims=True)
        st_ref[0] += jnp.sum(t_v, axis=1, keepdims=True)

    if tail_len == 0:
        # Steady state: no mask arithmetic at all.
        _acc(o, t)
    else:
        # Only the single global tail chunk pays for the iota/compare/select.
        is_tail = (pl.program_id(0) * npc + c) == (n_col - 1)

        @pl.when(jnp.logical_not(is_tail))
        def _steady():
            _acc(o, t)

        @pl.when(is_tail)
        def _masked_tail():
            col = jax.lax.broadcasted_iota(jnp.int32, o.shape, 1)
            valid = col < tail_len                      # static tail length
            _acc(jnp.where(valid, o, 0.0), jnp.where(valid, t, 0.0))


def _choose_block(R, Q, max_elems):
    """Pick (TR, chunk): TR % 8 == 0 or TR == R; chunk % 128 == 0 or chunk == Q."""
    if R * Q <= max_elems:
        return R, Q                                     # whole slab in one block
    if Q > _LANE and R * _LANE <= max_elems:
        # Typical segmentation shape: keep full rows, tile the reduce axis.
        chunk = min(Q, max(_LANE, (max_elems // R) // _LANE * _LANE))
        return R, chunk
    # Large R and/or tiny Q: tile rows too (bounded VMEM, keeps pipelining).
    if Q <= _LANE:
        chunk = Q
    else:
        chunk = min(Q, 4 * _LANE)                       # 512 (lane-aligned) or full Q
    tr = min(R, max(_SUBLANE, (max_elems // max(chunk, 1)) // _SUBLANE * _SUBLANE))
    return tr, chunk


def _per_row_sums(o2, t2, *, max_tile_bytes=None):
    """For an (R, Q) slab, return per-row (sum(o*t), sum(o), sum(t)), each (R,)."""
    R, Q = o2.shape
    itemsize = max(o2.dtype.itemsize, t2.dtype.itemsize)
    two_tc, vmem_limit = _chip_caps()

    # Per-block element budget: 2 inputs x 2 pipeline buffers at input precision
    # plus ~3 full-tile f32 temporaries (upcast + product) inside the kernel body,
    # with ~40% headroom inside the scoped VMEM limit.
    max_elems = max(int(0.6 * vmem_limit) // (4 * itemsize + 12), 1)
    if max_tile_bytes is not None:                      # test/debug override
        max_elems = min(max_elems, max(max_tile_bytes // itemsize, 1))

    tr, chunk = _choose_block(R, Q, max_elems)
    n_row = pl.cdiv(R, tr)
    n_col = pl.cdiv(Q, chunk)
    tail_len = Q % chunk                                # 0 => no masking anywhere

    # Optional 2-way split of the reduce axis so both v7x TensorCores stream HBM.
    # Only when it divides evenly: no clamped overflow step, no re-DMA, no waste.
    nsplit = 2 if (two_tc and n_row == 1 and n_col >= 2 and n_col % 2 == 0) else 1
    npc = n_col // nsplit

    kernel = functools.partial(_iou_partials_kernel,
                               npc=npc, n_col=n_col, tail_len=tail_len)

    in_spec = pl.BlockSpec((tr, chunk), lambda s, r, c: (r, s * npc + c))
    out_shape = jax.ShapeDtypeStruct((nsplit, R, 1), jnp.float32)
    out_spec = pl.BlockSpec((1, tr, 1), lambda s, r, c: (s, r, 0))

    split_sem = (pltpu.CORE_PARALLEL
                 if (_USE_CORE_PARALLEL and nsplit > 1) else "parallel")

    tp, so, st = pl.pallas_call(
        kernel,
        out_shape=(out_shape, out_shape, out_shape),
        grid=(nsplit, n_row, npc),
        in_specs=[in_spec, in_spec],
        out_specs=(out_spec, out_spec, out_spec),
        compiler_params=pltpu.CompilerParams(
            dimension_semantics=(split_sem, "parallel", "arbitrary"),
            vmem_limit_bytes=vmem_limit),
        cost_estimate=pl.CostEstimate(
            flops=4 * R * Q,
            transcendentals=0,
            bytes_accessed=2 * R * Q * itemsize + 3 * nsplit * R * 4),
    )(o2, t2)

    # Fold the (tiny) per-split partials; everything below is O(R) plain JAX.
    return tp.sum(axis=0)[:, 0], so.sum(axis=0)[:, 0], st.sum(axis=0)[:, 0]


def iou_loss(outputs, targets, *, class_dim=1, mode="macro", weights=None,
             eps=1e-7, max_tile_bytes=None):
    assert outputs.shape == targets.shape
    assert mode in ("micro", "macro", "weighted")
    nd = outputs.ndim
    cd = class_dim % nd
    shape = outputs.shape
    K = shape[cd]
    P = prod(shape[:cd])
    Q = prod(shape[cd + 1:])

    # Free (no-copy) view of the native layout: (P, K, Q) -> (P*K, Q).
    o2 = outputs.reshape(P * K, Q)
    t2 = targets.reshape(P * K, Q)

    tp_r, so_r, st_r = _per_row_sums(o2, t2, max_tile_bytes=max_tile_bytes)

    # Per-class statistics (fold the leading P groups; row r = p*K + k).
    tp = tp_r.reshape(P, K).sum(axis=0)
    so = so_r.reshape(P, K).sum(axis=0)
    st = st_r.reshape(P, K).sum(axis=0)
    fp = so - tp
    fn = st - tp

    eps = jnp.float32(eps)
    if mode == "micro":
        tp, fp, fn = tp.sum(), fp.sum(), fn.sum()
    union = tp + fp + fn
    score = (tp + eps * (union == 0)) / (union + eps)
    if mode == "micro":
        return 1.0 - score
    if mode == "macro":
        return 1.0 - jnp.mean(score)
    assert weights is not None and len(weights) == K
    w = jnp.asarray(weights, dtype=jnp.float32)
    return 1.0 - jnp.sum(score * w)


class IoULoss:
    """JAX/Pallas equivalent of catalyst.contrib.losses.IoULoss (forward only)."""

    def __init__(self, class_dim: int = 1, mode: str = "macro",
                 weights=None, eps: float = 1e-7):
        assert mode in ("micro", "macro", "weighted")
        self.class_dim = class_dim
        self.mode = mode
        self.weights = weights
        self.eps = eps

    def __call__(self, outputs, targets):
        return iou_loss(outputs, targets, class_dim=self.class_dim,
                        mode=self.mode, weights=self.weights, eps=self.eps)


def _iou_ref(outputs, targets, class_dim=1, mode="macro", weights=None, eps=1e-7):
    """Plain-JAX reference mirroring catalyst's iou() (threshold=None)."""
    o = outputs.astype(jnp.float32)
    t = targets.astype(jnp.float32)
    cd = class_dim % o.ndim
    dims = tuple(d for d in range(o.ndim) if d != cd)
    tp = jnp.sum(o * t, axis=dims)
    fp = jnp.sum(o * (1 - t), axis=dims)
    fn = jnp.sum(t * (1 - o), axis=dims)
    if mode == "micro":
        tp, fp, fn = tp.sum(), fp.sum(), fn.sum()
    union = tp + fp + fn
    score = (tp + eps * (union == 0)) / (union + eps)
    if mode == "micro":
        return 1.0 - score
    if mode == "macro":
        return 1.0 - jnp.mean(score)
    return 1.0 - jnp.sum(score * jnp.asarray(weights, jnp.float32))


if __name__ == "__main__":
    key = jax.random.PRNGKey(0)
    k1, k2, k3, k4, k5, k6 = jax.random.split(key, 6)

    # Module-default shapes: (batch=2, classes=4, H=16, W=16), class_dim=1.
    B, K, H, W = 2, 4, 16, 16
    outputs = jax.nn.sigmoid(jax.random.normal(k1, (B, K, H, W), jnp.float32))
    targets = (jax.random.uniform(k2, (B, K, H, W)) > 0.5).astype(jnp.float32)

    # macro (module defaults)
    loss = jax.block_until_ready(IoULoss()(outputs, targets))
    ref = _iou_ref(outputs, targets, mode="macro")
    assert abs(float(loss) - float(ref)) < 2e-5, (float(loss), float(ref))

    # micro / weighted modes
    loss_mi = IoULoss(mode="micro")(outputs, targets)
    ref_mi = _iou_ref(outputs, targets, mode="micro")
    assert abs(float(loss_mi) - float(ref_mi)) < 2e-5, (float(loss_mi), float(ref_mi))

    w = [0.1, 0.2, 0.3, 0.4]
    loss_w = IoULoss(mode="weighted", weights=w)(outputs, targets)
    ref_w = _iou_ref(outputs, targets, mode="weighted", weights=w)
    assert abs(float(loss_w) - float(ref_w)) < 2e-5, (float(loss_w), float(ref_w))

    # Column-chunked path with a pl.when-gated masked ragged tail (tiny budget).
    o3 = jax.nn.sigmoid(jax.random.normal(k3, (2, 4, 600), jnp.float32))
    t3 = (jax.random.uniform(k4, (2, 4, 600)) > 0.5).astype(jnp.float32)
    loss3 = iou_loss(o3, t3, max_tile_bytes=8 * 1024)
    ref3 = _iou_ref(o3, t3, mode="macro")
    assert abs(float(loss3) - float(ref3)) < 2e-5, (float(loss3), float(ref3))

    # Row-tiled path (R too big for the budget, tiny Q, partial last row block).
    o4 = jax.nn.sigmoid(jax.random.normal(k5, (2, 5, 64), jnp.float32))
    t4 = (jax.random.uniform(k6, (2, 5, 64)) > 0.5).astype(jnp.float32)
    loss4 = iou_loss(o4, t4, max_tile_bytes=2 * 1024)
    ref4 = _iou_ref(o4, t4, mode="macro")
    assert abs(float(loss4) - float(ref4)) < 2e-5, (float(loss4), float(ref4))

    # bf16 inputs (half the HBM traffic; kernel still accumulates in f32).
    o5 = o3.astype(jnp.bfloat16)
    t5 = t3.astype(jnp.bfloat16)
    loss5 = iou_loss(o5, t5)
    ref5 = _iou_ref(o5.astype(jnp.float32), t5.astype(jnp.float32), mode="macro")
    assert abs(float(loss5) - float(ref5)) < 1e-4, (float(loss5), float(ref5))

    jax.block_until_ready(loss5)
    print("KERNEL_OK")
</pallas_src>

<mosaic_0001>
module attributes {stable_mosaic.version = 11 : i64} {
  func.func @_iou_partials_kernel(%arg0: i32, %arg1: i32, %arg2: i32, %arg3: memref<8x256xf32, #tpu.memory_space<vmem>>, %arg4: memref<8x256xf32, #tpu.memory_space<vmem>>, %arg5: memref<1x8x1xf32, #tpu.memory_space<vmem>>, %arg6: memref<1x8x1xf32, #tpu.memory_space<vmem>>, %arg7: memref<1x8x1xf32, #tpu.memory_space<vmem>>) attributes {dimension_semantics = [#tpu.dimension_semantics<parallel>, #tpu.dimension_semantics<parallel>, #tpu.dimension_semantics<arbitrary>], iteration_bounds = array<i64: 1, 1, 1>, scalar_prefetch = 0 : i64, scratch_operands = 0 : i64, tpu.core_type = #tpu.core_type<tc>, window_params = [{transform_indices = @transform_0, window_bounds = array<i64: 8, 256>}, {transform_indices = @transform_1, window_bounds = array<i64: 8, 256>}, {transform_indices = @transform_2, window_bounds = array<i64: 1, 8, 1>}, {transform_indices = @transform_3, window_bounds = array<i64: 1, 8, 1>}, {transform_indices = @transform_4, window_bounds = array<i64: 1, 8, 1>}]} {
    %c0_i32 = arith.constant 0 : i32
    %0 = arith.cmpi eq, %arg2, %c0_i32 : i32
    %1 = arith.extui %0 : i1 to i32
    %c0_i32_0 = arith.constant 0 : i32
    %2 = arith.cmpi ne, %1, %c0_i32_0 : i32
    scf.if %2 {
      %cst_24 = arith.constant 0.000000e+00 : f32
      %30 = vector.broadcast %cst_24 : f32 to vector<1x8x1xf32>
      %c0_25 = arith.constant 0 : index
      %c0_26 = arith.constant 0 : index
      %c0_27 = arith.constant 0 : index
      %31 = vector.load %arg5[%c0_25, %c0_26, %c0_27] : memref<1x8x1xf32, #tpu.memory_space<vmem>>, vector<1x8x1xf32>
      tpu.vector_store %arg5[%c0_25, %c0_26, %c0_27], %30 {strides = array<i32>} : memref<1x8x1xf32, #tpu.memory_space<vmem>>, vector<1x8x1xf32>,
      %cst_28 = arith.constant 0.000000e+00 : f32
      %32 = vector.broadcast %cst_28 : f32 to vector<1x8x1xf32>
      %c0_29 = arith.constant 0 : index
      %c0_30 = arith.constant 0 : index
      %c0_31 = arith.constant 0 : index
      %33 = vector.load %arg6[%c0_29, %c0_30, %c0_31] : memref<1x8x1xf32, #tpu.memory_space<vmem>>, vector<1x8x1xf32>
      tpu.vector_store %arg6[%c0_29, %c0_30, %c0_31], %32 {strides = array<i32>} : memref<1x8x1xf32, #tpu.memory_space<vmem>>, vector<1x8x1xf32>,
      %cst_32 = arith.constant 0.000000e+00 : f32
      %34 = vector.broadcast %cst_32 : f32 to vector<1x8x1xf32>
      %c0_33 = arith.constant 0 : index
      %c0_34 = arith.constant 0 : index
      %c0_35 = arith.constant 0 : index
      %35 = vector.load %arg7[%c0_33, %c0_34, %c0_35] : memref<1x8x1xf32, #tpu.memory_space<vmem>>, vector<1x8x1xf32>
      tpu.vector_store %arg7[%c0_33, %c0_34, %c0_35], %34 {strides = array<i32>} : memref<1x8x1xf32, #tpu.memory_space<vmem>>, vector<1x8x1xf32>,
    } else {
    }
    %c0 = arith.constant 0 : index
    %c0_1 = arith.constant 0 : index
    %3 = vector.load %arg3[%c0, %c0_1] : memref<8x256xf32, #tpu.memory_space<vmem>>, vector<8x256xf32>
    %c0_2 = arith.constant 0 : index
    %c0_3 = arith.constant 0 : index
    %4 = vector.load %arg4[%c0_2, %c0_3] : memref<8x256xf32, #tpu.memory_space<vmem>>, vector<8x256xf32>
    %c0_4 = arith.constant 0 : index
    %c0_5 = arith.constant 0 : index
    %c0_6 = arith.constant 0 : index
    %5 = vector.load %arg5[%c0_4, %c0_5, %c0_6] : memref<1x8x1xf32, #tpu.memory_space<vmem>>, vector<1x8x1xf32>
    %6 = vector.shape_cast %5 : vector<1x8x1xf32> to vector<8x1xf32>
    %7 = arith.mulf %3, %4 : vector<8x256xf32>
    %cst = arith.constant dense<0.000000e+00> : vector<8xf32>
    %8 = vector.multi_reduction <add>, %7, %cst [1] : vector<8x256xf32> to vector<8xf32>
    %9 = vector.shape_cast %8 : vector<8xf32> to vector<8x1xf32>
    %10 = arith.addf %6, %9 : vector<8x1xf32>
    %c0_7 = arith.constant 0 : index
    %c0_8 = arith.constant 0 : index
    %c0_9 = arith.constant 0 : index
    %11 = vector.load %arg5[%c0_7, %c0_8, %c0_9] : memref<1x8x1xf32, #tpu.memory_space<vmem>>, vector<1x8x1xf32>
    %12 = vector.shape_cast %11 : vector<1x8x1xf32> to vector<8x1xf32>
    %13 = vector.shape_cast %10 : vector<8x1xf32> to vector<1x8x1xf32>
    tpu.vector_store %arg5[%c0_7, %c0_8, %c0_9], %13 {strides = array<i32>} : memref<1x8x1xf32, #tpu.memory_space<vmem>>, vector<1x8x1xf32>,
    %c0_10 = arith.constant 0 : index
    %c0_11 = arith.constant 0 : index
    %c0_12 = arith.constant 0 : index
    %14 = vector.load %arg6[%c0_10, %c0_11, %c0_12] : memref<1x8x1xf32, #tpu.memory_space<vmem>>, vector<1x8x1xf32>
    %15 = vector.shape_cast %14 : vector<1x8x1xf32> to vector<8x1xf32>
    %cst_13 = arith.constant dense<0.000000e+00> : vector<8xf32>
    %16 = vector.multi_reduction <add>, %3, %cst_13 [1] : vector<8x256xf32> to vector<8xf32>
    %17 = vector.shape_cast %16 : vector<8xf32> to vector<8x1xf32>
    %18 = arith.addf %15, %17 : vector<8x1xf32>
    %c0_14 = arith.constant 0 : index
    %c0_15 = arith.constant 0 : index
    %c0_16 = arith.constant 0 : index
    %19 = vector.load %arg6[%c0_14, %c0_15, %c0_16] : memref<1x8x1xf32, #tpu.memory_space<vmem>>, vector<1x8x1xf32>
    %20 = vector.shape_cast %19 : vector<1x8x1xf32> to vector<8x1xf32>
    %21 = vector.shape_cast %18 : vector<8x1xf32> to vector<1x8x1xf32>
    tpu.vector_store %arg6[%c0_14, %c0_15, %c0_16], %21 {strides = array<i32>} : memref<1x8x1xf32, #tpu.memory_space<vmem>>, vector<1x8x1xf32>,
    %c0_17 = arith.constant 0 : index
    %c0_18 = arith.constant 0 : index
    %c0_19 = arith.constant 0 : index
    %22 = vector.load %arg7[%c0_17, %c0_18, %c0_19] : memref<1x8x1xf32, #tpu.memory_space<vmem>>, vector<1x8x1xf32>
    %23 = vector.shape_cast %22 : vector<1x8x1xf32> to vector<8x1xf32>
    %cst_20 = arith.constant dense<0.000000e+00> : vector<8xf32>
    %24 = vector.multi_reduction <add>, %4, %cst_20 [1] : vector<8x256xf32> to vector<8xf32>
    %25 = vector.shape_cast %24 : vector<8xf32> to vector<8x1xf32>
    %26 = arith.addf %23, %25 : vector<8x1xf32>
    %c0_21 = arith.constant 0 : index
    %c0_22 = arith.constant 0 : index
    %c0_23 = arith.constant 0 : index
    %27 = vector.load %arg7[%c0_21, %c0_22, %c0_23] : memref<1x8x1xf32, #tpu.memory_space<vmem>>, vector<1x8x1xf32>
    %28 = vector.shape_cast %27 : vector<1x8x1xf32> to vector<8x1xf32>
    %29 = vector.shape_cast %26 : vector<8x1xf32> to vector<1x8x1xf32>
    tpu.vector_store %arg7[%c0_21, %c0_22, %c0_23], %29 {strides = array<i32>} : memref<1x8x1xf32, #tpu.memory_space<vmem>>, vector<1x8x1xf32>,
    return
  }
  func.func @transform_0(%arg0: i32, %arg1: i32, %arg2: i32) -> (i32, i32) {
    %c1_i32 = arith.constant 1 : i32
    %0 = arith.muli %arg0, %c1_i32 : i32
    %1 = arith.addi %0, %arg2 : i32
    %c0_i32 = arith.constant 0 : i32
    return %arg1, %1 : i32, i32
  }
  func.func @transform_1(%arg0: i32, %arg1: i32, %arg2: i32) -> (i32, i32) {
    %c1_i32 = arith.constant 1 : i32
    %0 = arith.muli %arg0, %c1_i32 : i32
    %1 = arith.addi %0, %arg2 : i32
    %c0_i32 = arith.constant 0 : i32
    return %arg1, %1 : i32, i32
  }
  func.func @transform_2(%arg0: i32, %arg1: i32, %arg2: i32) -> (i32, i32, i32) {
    %c0_i32 = arith.constant 0 : i32
    %c0_i32_0 = arith.constant 0 : i32
    return %arg0, %arg1, %c0_i32 : i32, i32, i32
  }
  func.func @transform_3(%arg0: i32, %arg1: i32, %arg2: i32) -> (i32, i32, i32) {
    %c0_i32 = arith.constant 0 : i32
    %c0_i32_0 = arith.constant 0 : i32
    return %arg0, %arg1, %c0_i32 : i32, i32, i32
  }
  func.func @transform_4(%arg0: i32, %arg1: i32, %arg2: i32) -> (i32, i32, i32) {
    %c0_i32 = arith.constant 0 : i32
    %c0_i32_0 = arith.constant 0 : i32
    return %arg0, %arg1, %c0_i32 : i32, i32, i32
  }
}

</mosaic_0001>

<llo_original>
// kernel: tpu_custom_call.1
$region0: #{tpu_custom_call.1}
  #allocation0 [shape = 'u32[]', space=smem, size = 0x4, offset = 0x4, fixed_abs, tag = 'smem constant byte address 0x4 - core index']
  #allocation1 [shape = 'u32[144,128]{1,0:T(1,128)}', space=vmem, size = 0x12000, scoped, tag = 'internal scratch']
  %s0 = inlined_call_operand.hbm [shape: f32[8,256], index: 0, kind: input, shape index: {}]
  %s1 = inlined_call_operand.hbm [shape: f32[8,256], index: 1, kind: input, shape index: {}]
  %s2 = inlined_call_operand.vmem [shape: f32[1,8,1], index: 2, kind: output, shape index: {0}]
  %s3 = inlined_call_operand.vmem [shape: f32[1,8,1], index: 3, kind: output, shape index: {1}]
  %s4 = inlined_call_operand.vmem [shape: f32[1,8,1], index: 4, kind: output, shape index: {2}]
  %5 = xla_tuple %s2, %s3, %s4
  %s6 = sld [smem:[#allocation0]]
  $region46: #{tpu_custom_call.1} parent=0
    _
  %s8 = ssub.s32 1, %s6
  %s9 = scalar_select 0, %s8, %s6
  $region1: #{tpu_custom_call.1} parent=0
    #allocation2 [shape = 'u8[8192]{0}', space=vmem, size = 0x2000, scoped, tag = 'input window, operand 0, single buffered']
    #allocation3 [shape = 's32[1]{0}', space=sflag, size = 0x4, scoped, tag = 'scoped memory for tpu_custom_call.1']
    #allocation4 [shape = 'u8[8192]{0}', space=vmem, size = 0x2000, scoped, tag = 'input window, operand 1, single buffered']
    #allocation5 [shape = 's32[1]{0}', space=sflag, size = 0x4, scoped, tag = 'scoped memory for tpu_custom_call.1']
    %10 = vsyncpa [#allocation3], 0
    %11 = vsyncpa [#allocation5], 0
    // Predicated region
    $region2: #{tpu_custom_call.1} parent=1 // pred_check
      _
    $region3: #{tpu_custom_call.1} parent=1 // pred_check_branch
      %13 = sbr.rel (0) target = $region5
    $region4: #{tpu_custom_call.1} parent=1 // pred_region
      %s14 = sadd.s32 0, 0
      %s15 = smul.u32 2, %s14
      %s17 = ssub.s32 256, 256
      %18 = vsyncadd [#allocation3], %s17
      %s19 = smul.addr %s15, 128
      %s20 = scalar_lea.hbm %s0, %s19
      %s22 = sshll.u32 [#allocation2], 4
      %s23 = int_to_ptr.vmem [resolvable:$true] %s22
      %25 = dma.hbm_to_vmem [thread:$0]  %s20, 256, %s23, [#allocation3]
    $region5: #{tpu_custom_call.1} parent=1 // pred_fallthru
      _
    // Predicated region
    $region6: #{tpu_custom_call.1} parent=1 // pred_check
      _
    $region7: #{tpu_custom_call.1} parent=1 // pred_check_branch
      %27 = sbr.rel (0) target = $region9
    $region8: #{tpu_custom_call.1} parent=1 // pred_region
      %s28 = sadd.s32 0, 0
      %s29 = smul.u32 2, %s28
      %s31 = ssub.s32 256, 256
      %32 = vsyncadd [#allocation5], %s31
      %s33 = smul.addr %s29, 128
      %s34 = scalar_lea.hbm %s1, %s33
      %s36 = sshll.u32 [#allocation4], 4
      %s37 = int_to_ptr.vmem [resolvable:$true] %s36
      %39 = dma.hbm_to_vmem [thread:$0]  %s34, 256, %s37, [#allocation5]
    $region9: #{tpu_custom_call.1} parent=1 // pred_fallthru
      _
    // Predicated region
    $region10: #{tpu_custom_call.1} parent=1 // pred_check
      _
    $region11: #{tpu_custom_call.1} parent=1 // pred_check_branch
      %41 = sbr.rel (0) target = $region13
    $region12: #{tpu_custom_call.1} parent=1 // pred_region
      %42 = dma.done [#allocation3], 256
    $region13: #{tpu_custom_call.1} parent=1 // pred_fallthru
      _
    // Predicated region
    $region14: #{tpu_custom_call.1} parent=1 // pred_check
      _
    $region15: #{tpu_custom_call.1} parent=1 // pred_check_branch
      %44 = sbr.rel (0) target = $region17
    $region16: #{tpu_custom_call.1} parent=1 // pred_region
      %45 = dma.done [#allocation5], 256
    $region17: #{tpu_custom_call.1} parent=1 // pred_fallthru
      _
    %s46 = sadd.s32 0, 0
    %s47 = smul.u32 2, %s46
    %s48 = sadd.s32 0, 0
    %s49 = smul.u32 2, %s48
    %p50 = scmp.eq.s32.totalorder 0, 0
    // Predicated region
    $region18: #{tpu_custom_call.1} parent=1 // pred_check
      %p51 = pneg %p50
    $region19: #{tpu_custom_call.1} parent=1 // pred_check_branch
      %53 = sbr.rel (%p51) target = $region21
    $region20: #{tpu_custom_call.1} parent=1 // pred_region
      %vm54 = vcmask 7168
      %55 = vst.msk [vmem:[%s2] sm:$0xff] %vm54, 0.0
      %56 = vst.msk [vmem:[%s3] sm:$0xff] %vm54, 0.0
      %57 = vst.msk [vmem:[%s4] sm:$0xff] %vm54, 0.0
    $region21: #{tpu_custom_call.1} parent=1 // pred_fallthru
      _
    %v58 = vld [vmem:[#allocation2] sm:$0xff]
    %v59 = vld [vmem:[#allocation2 + $0x8] sm:$0xff]
    %v60 = vld [vmem:[#allocation4] sm:$0xff]
    %v61 = vld [vmem:[#allocation4 + $0x8] sm:$0xff]
    %v62 = vld [vmem:[%s2] sm:$0xff]
    %v63 = vmul.f32 %v58, %v60
    %v64 = vmul.f32 %v59, %v61
    %v65 = vadd.f32 %v63, %v64
    %66 = vadd.xlane.f32.xlu0 %v65
    %v67 = vpop.xlane.xlu0 %66
    %v68 = vadd.f32 %v62, %v67
    %vm69 = vcmask 7168
    %70 = vst.msk [vmem:[%s2] sm:$0xff] %vm69, %v68
    %v71 = vld [vmem:[%s3] sm:$0xff]
    %v72 = vadd.f32 %v58, %v59
    %73 = vadd.xlane.f32.xlu0 %v72
    %v74 = vpop.xlane.xlu0 %73
    %v75 = vadd.f32 %v71, %v74
    %76 = vst.msk [vmem:[%s3] sm:$0xff] %vm69, %v75
    %v77 = vld [vmem:[%s4] sm:$0xff]
    %v78 = vadd.f32 %v60, %v61
    %79 = vadd.xlane.f32.xlu0 %v78
    %v80 = vpop.xlane.xlu0 %79
    %v81 = vadd.f32 %v77, %v80
    %82 = vst.msk [vmem:[%s4] sm:$0xff] %vm69, %v81
    // Predicated region
    $region22: #{tpu_custom_call.1} parent=1 // pred_check
      _
    $region23: #{tpu_custom_call.1} parent=1 // pred_check_branch
      %84 = sbr.rel (0) target = $region25
    $region24: #{tpu_custom_call.1} parent=1 // pred_region
      _
    $region25: #{tpu_custom_call.1} parent=1 // pred_fallthru
      _
    // Predicated region
    $region26: #{tpu_custom_call.1} parent=1 // pred_check
      _
    $region27: #{tpu_custom_call.1} parent=1 // pred_check_branch
      %86 = sbr.rel (0) target = $region29
    $region28: #{tpu_custom_call.1} parent=1 // pred_region
      _
    $region29: #{tpu_custom_call.1} parent=1 // pred_fallthru
      _
    // Predicated region
    $region30: #{tpu_custom_call.1} parent=1 // pred_check
      _
    $region31: #{tpu_custom_call.1} parent=1 // pred_check_branch
      %88 = sbr.rel (0) target = $region33
    $region32: #{tpu_custom_call.1} parent=1 // pred_region
      _
    $region33: #{tpu_custom_call.1} parent=1 // pred_fallthru
      _
    // Predicated region
    $region34: #{tpu_custom_call.1} parent=1 // pred_check
      _
    $region35: #{tpu_custom_call.1} parent=1 // pred_check_branch
      %90 = sbr.rel (0) target = $region37
    $region36: #{tpu_custom_call.1} parent=1 // pred_region
      _
    $region37: #{tpu_custom_call.1} parent=1 // pred_fallthru
      _
    // Predicated region
    $region38: #{tpu_custom_call.1} parent=1 // pred_check
      _
    $region39: #{tpu_custom_call.1} parent=1 // pred_check_branch
      %92 = sbr.rel (0) target = $region41
    $region40: #{tpu_custom_call.1} parent=1 // pred_region
      _
    $region41: #{tpu_custom_call.1} parent=1 // pred_fallthru
      _
    // Predicated region
    $region42: #{tpu_custom_call.1} parent=1 // pred_check
      _
    $region43: #{tpu_custom_call.1} parent=1 // pred_check_branch
      %94 = sbr.rel (0) target = $region45
    $region44: #{tpu_custom_call.1} parent=1 // pred_region
      _
    $region45: #{tpu_custom_call.1} parent=1 // pred_fallthru
      _
    %95 = vsyncpa [#allocation3], 1
    %96 = vsyncpa [#allocation5], 1

</llo_original>
